<compile_context>
chip_gen: v7x
topology: tpu7x:2x2x1
jax: 0.10.0
libtpu: 0.0.40
codegen_flags: <defaults>
</compile_context>

<pallas_src>
import jax
import jax.numpy as jnp
from jax.experimental import pallas as pl
from jax.experimental.pallas import tpu as pltpu


def _round_up(a: int, m: int) -> int:
    return (a + m - 1) // m * m


def _device_kind() -> str:
    try:
        return jax.devices()[0].device_kind.lower()
    except Exception:
        return ""


def _vmem_capacity_bytes() -> int:
    try:
        return int(pltpu.get_tpu_info().vmem_capacity_bytes)
    except Exception:
        kind = _device_kind()
        if "v7" in kind or "7x" in kind:
            return 64 * 1024 * 1024
        return 128 * 1024 * 1024


def _gelu_in_bf16() -> bool:
    # v2-v5 have no bf16 VPU/EUP; v6e/v7x do, and there the f32 GELU is the
    # VLIW slot closest to binding -> do it in bf16 on new generations.
    kind = _device_kind()
    return not any(g in kind for g in ("v2", "v3", "v4", "v5"))


def _make_kernel(gelu_bf16: bool):
    def kernel(x_ref, w1_ref, b1_ref, w2_ref, b2_ref, o_ref):
        """out = x + Linear2(gelu(Linear1(x))) for one row-tile of x.

        x_ref : (tile_n, H) x.dtype   w1_ref: (H, Mp) bf16   b1_ref: (1, Mp) f32
        w2_ref: (Mp, H) bf16          b2_ref: (1, H)  f32    o_ref : (tile_n, H)
        """
        x = x_ref[...]                                   # native dtype, reused for residual
        # ---- Linear 1 (MXU, bf16 operands, f32 accumulation) ----
        h = jnp.dot(x.astype(jnp.bfloat16), w1_ref[...],
                    preferred_element_type=jnp.float32)
        h = h + b1_ref[...]                              # f32 bias add
        # ---- GELU (tanh approximation) ----
        # TODO(synk): PyTorch nn.GELU() defaults to the exact erf GELU; this uses
        # the tanh approximation (common ViT choice) -- switch approximate=False
        # if the wrapped module uses the erf variant.
        if gelu_bf16:
            h = jax.nn.gelu(h.astype(jnp.bfloat16), approximate=True)
        else:
            h = jax.nn.gelu(h, approximate=True).astype(jnp.bfloat16)
        # ---- Linear 2 (MXU, bf16 operands, f32 accumulation) ----
        y = jnp.dot(h, w2_ref[...], preferred_element_type=jnp.float32)
        y = y + b2_ref[...]                              # f32 bias add
        # ---- fused residual add in f32, cast to output dtype ----
        o_ref[...] = (x.astype(jnp.float32) + y).astype(o_ref.dtype)

    return kernel


def prepare_residual_mlp_params(w1, b1, w2, b2):
    """One-time parameter prep (pad MLP dim to 128, cast weights to bf16).

    Keeps the pad+cast HBM traffic out of the per-forward path.
    """
    H, M = w1.shape
    Mp = _round_up(M, 128)
    w1p = jnp.pad(w1.astype(jnp.float32), ((0, 0), (0, Mp - M))).astype(jnp.bfloat16)
    w2p = jnp.pad(w2.astype(jnp.float32), ((0, Mp - M), (0, 0))).astype(jnp.bfloat16)
    b1p = jnp.pad(b1.astype(jnp.float32), (0, Mp - M)).reshape(1, Mp)
    b2p = b2.astype(jnp.float32).reshape(1, H)
    return {"w1": w1p, "b1": b1p, "w2": w2p, "b2": b2p, "hidden": H, "mlp_dim": M}


def residual_mlp(x, params, *, tile_n: int | None = None):
    """x: [B, S, H]. Returns x + MLP(x), same shape and dtype as x."""
    B, S, H = x.shape
    assert H == params["hidden"], "hidden dim mismatch with prepared params"
    w1p, b1p, w2p, b2p = params["w1"], params["b1"], params["w2"], params["b2"]
    Mp = w1p.shape[1]
    N = B * S
    xb = jnp.dtype(x.dtype).itemsize

    vmem_cap = _vmem_capacity_bytes()
    small_vmem = vmem_cap <= 64 * 1024 * 1024          # v7x-class TensorCore
    if tile_n is None:
        # Smaller tiles on 64 MiB-VMEM chips: fits comfortably and gives the
        # 2 TCs more parallel row-tiles; 512 elsewhere (per-step overhead is
        # negligible vs. the matmul work).
        tile_n = 256 if small_vmem else 512
    tile_n = max(8, min(tile_n, _round_up(N, 8)))
    grid = (pl.cdiv(N, tile_n),)                        # ragged last tile is masked

    # Free collapse of leading dims; no dtype cast, no row/feature padding.
    x2d = x.reshape(N, H)
    gelu_bf16 = _gelu_in_bf16()

    def _call(single_buffer_weights: bool):
        wkw = {"pipeline_mode": pl.Buffered(1)} if single_buffer_weights else {}
        in_specs = [
            pl.BlockSpec((tile_n, H), lambda i: (i, 0)),        # x row-tile (streamed)
            pl.BlockSpec((H, Mp), lambda i: (0, 0), **wkw),     # W1 (VMEM-resident)
            pl.BlockSpec((1, Mp), lambda i: (0, 0), **wkw),     # b1
            pl.BlockSpec((Mp, H), lambda i: (0, 0), **wkw),     # W2 (VMEM-resident)
            pl.BlockSpec((1, H), lambda i: (0, 0), **wkw),      # b2
        ]
        out_specs = pl.BlockSpec((tile_n, H), lambda i: (i, 0))

        wbuf = 1 if single_buffer_weights else 2
        vmem_needed = (
            2 * tile_n * H * xb              # x tiles (double-buffered)
            + 2 * tile_n * H * xb            # out tiles
            + wbuf * 2 * H * Mp * 2          # W1 + W2 (bf16)
            + wbuf * (Mp + H) * 4            # biases (f32)
            + tile_n * Mp * (4 + 2)          # h (f32 acc) + bf16 copy
            + tile_n * H * (4 + 2)           # y (f32 acc) + bf16 x copy
        )
        cap = 48 * 1024 * 1024 if small_vmem else 64 * 1024 * 1024
        vmem_limit = min(cap, max(32 * 1024 * 1024, int(1.3 * vmem_needed)))

        cost = pl.CostEstimate(
            flops=4 * N * H * Mp,                        # two matmuls
            transcendentals=N * Mp,                      # tanh in GELU
            bytes_accessed=(2 * N * H * xb               # x in + out
                            + 2 * H * Mp * 2             # W1 + W2 (bf16)
                            + (Mp + H) * 4),             # biases
        )

        return pl.pallas_call(
            _make_kernel(gelu_bf16),
            out_shape=jax.ShapeDtypeStruct((N, H), x.dtype),
            grid=grid,
            in_specs=in_specs,
            out_specs=out_specs,
            compiler_params=pltpu.CompilerParams(
                dimension_semantics=("parallel",),
                vmem_limit_bytes=vmem_limit,
            ),
            cost_estimate=cost,
        )(x2d, w1p, b1p, w2p, b2p)

    try:
        out2d = _call(True)                 # single-buffered resident weights
    except Exception:
        out2d = _call(False)                # fallback: default pipelining

    return out2d.reshape(B, S, H)


if __name__ == "__main__":
    # Small ViT-like shapes: batch=2, seq=8, hidden=32, mlp dim = 4*hidden.
    B, S, H = 2, 8, 32
    M = 4 * H

    key = jax.random.PRNGKey(0)
    kx, k1, k2, k3, k4 = jax.random.split(key, 5)

    x = jax.random.normal(kx, (B, S, H), dtype=jnp.float32)
    # Deterministic synthetic parameters for the wrapped MLP module.
    w1 = jax.random.normal(k1, (H, M), dtype=jnp.float32) * (1.0 / jnp.sqrt(H))
    b1 = jax.random.normal(k2, (M,), dtype=jnp.float32) * 0.02
    w2 = jax.random.normal(k3, (M, H), dtype=jnp.float32) * (1.0 / jnp.sqrt(M))
    b2 = jax.random.normal(k4, (H,), dtype=jnp.float32) * 0.02

    params = prepare_residual_mlp_params(w1, b1, w2, b2)   # one-time prep
    out = residual_mlp(x, params)
    out = jax.block_until_ready(out)
    assert out.shape == x.shape and out.dtype == x.dtype

    # Reference matching the kernel numerics (bf16 matmuls, f32 accumulation,
    # GELU in the same dtype the kernel uses on this chip generation).
    gelu_bf16 = _gelu_in_bf16()
    h_ref = jnp.dot(x.astype(jnp.bfloat16), w1.astype(jnp.bfloat16),
                    preferred_element_type=jnp.float32) + b1
    if gelu_bf16:
        h_ref = jax.nn.gelu(h_ref.astype(jnp.bfloat16), approximate=True)
    else:
        h_ref = jax.nn.gelu(h_ref, approximate=True).astype(jnp.bfloat16)
    y_ref = jnp.dot(h_ref, w2.astype(jnp.bfloat16),
                    preferred_element_type=jnp.float32) + b2
    ref_bf16 = x + y_ref
    assert jnp.allclose(out, ref_bf16, atol=2e-2, rtol=2e-2)

    # Pure-f32 Residual(MLP).forward reference -- looser tolerance
    # (bf16 matmul / GELU rounding only).
    ref_f32 = x + (jax.nn.gelu(x @ w1 + b1, approximate=True) @ w2 + b2)
    assert jnp.allclose(out, ref_f32, atol=1e-1, rtol=5e-2)

    print("KERNEL_OK")
</pallas_src>

<mosaic_0001>
module attributes {stable_mosaic.version = 11 : i64} {
  func.func @kernel(%arg0: i32, %arg1: memref<16x32xf32, #tpu.memory_space<vmem>>, %arg2: memref<32x128xbf16, #tpu.memory_space<vmem>>, %arg3: memref<1x128xf32, #tpu.memory_space<vmem>>, %arg4: memref<128x32xbf16, #tpu.memory_space<vmem>>, %arg5: memref<1x32xf32, #tpu.memory_space<vmem>>, %arg6: memref<16x32xf32, #tpu.memory_space<vmem>>) attributes {dimension_semantics = [#tpu.dimension_semantics<parallel>], iteration_bounds = array<i64: 1>, scalar_prefetch = 0 : i64, scratch_operands = 0 : i64, tpu.core_type = #tpu.core_type<tc>, window_params = [{transform_indices = @transform_0, window_bounds = array<i64: 16, 32>}, {pipeline_mode = #tpu.pipeline_mode<synchronous>, transform_indices = @transform_1, window_bounds = array<i64: 32, 128>}, {pipeline_mode = #tpu.pipeline_mode<synchronous>, transform_indices = @transform_2, window_bounds = array<i64: 1, 128>}, {pipeline_mode = #tpu.pipeline_mode<synchronous>, transform_indices = @transform_3, window_bounds = array<i64: 128, 32>}, {pipeline_mode = #tpu.pipeline_mode<synchronous>, transform_indices = @transform_4, window_bounds = array<i64: 1, 32>}, {transform_indices = @transform_5, window_bounds = array<i64: 16, 32>}]} {
    %c0 = arith.constant 0 : index
    %c0_0 = arith.constant 0 : index
    %0 = vector.load %arg1[%c0, %c0_0] : memref<16x32xf32, #tpu.memory_space<vmem>>, vector<16x32xf32>
    %1 = arith.truncf %0 : vector<16x32xf32> to vector<16x32xbf16>
    %c0_1 = arith.constant 0 : index
    %c0_2 = arith.constant 0 : index
    %2 = vector.load %arg2[%c0_1, %c0_2] : memref<32x128xbf16, #tpu.memory_space<vmem>>, vector<32x128xbf16>
    %cst = arith.constant dense<0.000000e+00> : vector<16x128xf32>
    %3 = tpu.matmul %1, %2, %cst {dimension_numbers = #tpu.dot_dimension_numbers<[1], [0], [0], [1], [0, 0, 1, 1], [], []>} : vector<16x32xbf16>, vector<32x128xbf16>, vector<16x128xf32> -> vector<16x128xf32>
    %c0_3 = arith.constant 0 : index
    %c0_4 = arith.constant 0 : index
    %4 = vector.load %arg3[%c0_3, %c0_4] : memref<1x128xf32, #tpu.memory_space<vmem>>, vector<1x128xf32>
    %5 = vector.broadcast %4 : vector<1x128xf32> to vector<16x128xf32>
    %6 = arith.addf %3, %5 : vector<16x128xf32>
    %7 = arith.truncf %6 : vector<16x128xf32> to vector<16x128xbf16>
    %8 = arith.mulf %7, %7 : vector<16x128xbf16>
    %9 = arith.mulf %7, %8 : vector<16x128xbf16>
    %cst_5 = arith.constant 4.467770e-02 : bf16
    %10 = vector.broadcast %cst_5 : bf16 to vector<16x128xbf16>
    %11 = arith.mulf %10, %9 : vector<16x128xbf16>
    %12 = arith.addf %7, %11 : vector<16x128xbf16>
    %cst_6 = arith.constant 7.968750e-01 : bf16
    %13 = vector.broadcast %cst_6 : bf16 to vector<16x128xbf16>
    %14 = arith.mulf %13, %12 : vector<16x128xbf16>
    %15 = math.tanh %14 : vector<16x128xbf16>
    %cst_7 = arith.constant 1.000000e+00 : bf16
    %16 = vector.broadcast %cst_7 : bf16 to vector<16x128xbf16>
    %17 = arith.addf %16, %15 : vector<16x128xbf16>
    %cst_8 = arith.constant 5.000000e-01 : bf16
    %18 = vector.broadcast %cst_8 : bf16 to vector<16x128xbf16>
    %19 = arith.mulf %18, %17 : vector<16x128xbf16>
    %20 = arith.mulf %7, %19 : vector<16x128xbf16>
    %c0_9 = arith.constant 0 : index
    %c0_10 = arith.constant 0 : index
    %21 = vector.load %arg4[%c0_9, %c0_10] : memref<128x32xbf16, #tpu.memory_space<vmem>>, vector<128x32xbf16>
    %cst_11 = arith.constant dense<0.000000e+00> : vector<16x32xf32>
    %22 = tpu.matmul %20, %21, %cst_11 {dimension_numbers = #tpu.dot_dimension_numbers<[1], [0], [0], [1], [0, 0, 1, 1], [], []>} : vector<16x128xbf16>, vector<128x32xbf16>, vector<16x32xf32> -> vector<16x32xf32>
    %c0_12 = arith.constant 0 : index
    %c0_13 = arith.constant 0 : index
    %23 = vector.load %arg5[%c0_12, %c0_13] : memref<1x32xf32, #tpu.memory_space<vmem>>, vector<1x32xf32>
    %24 = vector.broadcast %23 : vector<1x32xf32> to vector<16x32xf32>
    %25 = arith.addf %22, %24 : vector<16x32xf32>
    %26 = arith.addf %0, %25 : vector<16x32xf32>
    %c0_14 = arith.constant 0 : index
    %c0_15 = arith.constant 0 : index
    %27 = vector.load %arg6[%c0_14, %c0_15] : memref<16x32xf32, #tpu.memory_space<vmem>>, vector<16x32xf32>
    tpu.vector_store %arg6[%c0_14, %c0_15], %26 {strides = array<i32>} : memref<16x32xf32, #tpu.memory_space<vmem>>, vector<16x32xf32>,
    return
  }
  func.func @transform_0(%arg0: i32) -> (i32, i32) {
    %c0_i32 = arith.constant 0 : i32
    %c0_i32_0 = arith.constant 0 : i32
    return %arg0, %c0_i32 : i32, i32
  }
  func.func @transform_1(%arg0: i32) -> (i32, i32) {
    %c0_i32 = arith.constant 0 : i32
    %c0_i32_0 = arith.constant 0 : i32
    %c0_i32_1 = arith.constant 0 : i32
    return %c0_i32, %c0_i32_0 : i32, i32
  }
  func.func @transform_2(%arg0: i32) -> (i32, i32) {
    %c0_i32 = arith.constant 0 : i32
    %c0_i32_0 = arith.constant 0 : i32
    %c0_i32_1 = arith.constant 0 : i32
    return %c0_i32, %c0_i32_0 : i32, i32
  }
  func.func @transform_3(%arg0: i32) -> (i32, i32) {
    %c0_i32 = arith.constant 0 : i32
    %c0_i32_0 = arith.constant 0 : i32
    %c0_i32_1 = arith.constant 0 : i32
    return %c0_i32, %c0_i32_0 : i32, i32
  }
  func.func @transform_4(%arg0: i32) -> (i32, i32) {
    %c0_i32 = arith.constant 0 : i32
    %c0_i32_0 = arith.constant 0 : i32
    %c0_i32_1 = arith.constant 0 : i32
    return %c0_i32, %c0_i32_0 : i32, i32
  }
  func.func @transform_5(%arg0: i32) -> (i32, i32) {
    %c0_i32 = arith.constant 0 : i32
    %c0_i32_0 = arith.constant 0 : i32
    return %arg0, %c0_i32 : i32, i32
  }
}

module attributes {stable_mosaic.version = 11 : i64} {
  func.func @kernel(%arg0: i32, %arg1: memref<16x32xf32, #tpu.memory_space<vmem>>, %arg2: memref<32x128xbf16, #tpu.memory_space<vmem>>, %arg3: memref<1x128xf32, #tpu.memory_space<vmem>>, %arg4: memref<128x32xbf16, #tpu.memory_space<vmem>>, %arg5: memref<1x32xf32, #tpu.memory_space<vmem>>, %arg6: memref<16x32xf32, #tpu.memory_space<vmem>>) attributes {dimension_semantics = [#tpu.dimension_semantics<parallel>], iteration_bounds = array<i64: 1>, scalar_prefetch = 0 : i64, scratch_operands = 0 : i64, tpu.core_type = #tpu.core_type<tc>, window_params = [{transform_indices = @transform_0, window_bounds = array<i64: 16, 32>}, {pipeline_mode = #tpu.pipeline_mode<synchronous>, transform_indices = @transform_1, window_bounds = array<i64: 32, 128>}, {pipeline_mode = #tpu.pipeline_mode<synchronous>, transform_indices = @transform_2, window_bounds = array<i64: 1, 128>}, {pipeline_mode = #tpu.pipeline_mode<synchronous>, transform_indices = @transform_3, window_bounds = array<i64: 128, 32>}, {pipeline_mode = #tpu.pipeline_mode<synchronous>, transform_indices = @transform_4, window_bounds = array<i64: 1, 32>}, {transform_indices = @transform_5, window_bounds = array<i64: 16, 32>}]} {
    %c0 = arith.constant 0 : index
    %c0_0 = arith.constant 0 : index
    %0 = vector.load %arg1[%c0, %c0_0] : memref<16x32xf32, #tpu.memory_space<vmem>>, vector<16x32xf32>
    %1 = arith.truncf %0 : vector<16x32xf32> to vector<16x32xbf16>
    %c0_1 = arith.constant 0 : index
    %c0_2 = arith.constant 0 : index
    %2 = vector.load %arg2[%c0_1, %c0_2] : memref<32x128xbf16, #tpu.memory_space<vmem>>, vector<32x128xbf16>
    %cst = arith.constant dense<0.000000e+00> : vector<16x128xf32>
    %3 = tpu.matmul %1, %2, %cst {dimension_numbers = #tpu.dot_dimension_numbers<[1], [0], [0], [1], [0, 0, 1, 1], [], []>} : vector<16x32xbf16>, vector<32x128xbf16>, vector<16x128xf32> -> vector<16x128xf32>
    %c0_3 = arith.constant 0 : index
    %c0_4 = arith.constant 0 : index
    %4 = vector.load %arg3[%c0_3, %c0_4] : memref<1x128xf32, #tpu.memory_space<vmem>>, vector<1x128xf32>
    %5 = vector.broadcast %4 : vector<1x128xf32> to vector<16x128xf32>
    %6 = arith.addf %3, %5 : vector<16x128xf32>
    %7 = arith.truncf %6 : vector<16x128xf32> to vector<16x128xbf16>
    %8 = arith.mulf %7, %7 : vector<16x128xbf16>
    %9 = arith.mulf %7, %8 : vector<16x128xbf16>
    %cst_5 = arith.constant 4.467770e-02 : bf16
    %10 = vector.broadcast %cst_5 : bf16 to vector<16x128xbf16>
    %11 = arith.mulf %10, %9 : vector<16x128xbf16>
    %12 = arith.addf %7, %11 : vector<16x128xbf16>
    %cst_6 = arith.constant 7.968750e-01 : bf16
    %13 = vector.broadcast %cst_6 : bf16 to vector<16x128xbf16>
    %14 = arith.mulf %13, %12 : vector<16x128xbf16>
    %15 = math.tanh %14 : vector<16x128xbf16>
    %cst_7 = arith.constant 1.000000e+00 : bf16
    %16 = vector.broadcast %cst_7 : bf16 to vector<16x128xbf16>
    %17 = arith.addf %16, %15 : vector<16x128xbf16>
    %cst_8 = arith.constant 5.000000e-01 : bf16
    %18 = vector.broadcast %cst_8 : bf16 to vector<16x128xbf16>
    %19 = arith.mulf %18, %17 : vector<16x128xbf16>
    %20 = arith.mulf %7, %19 : vector<16x128xbf16>
    %c0_9 = arith.constant 0 : index
    %c0_10 = arith.constant 0 : index
    %21 = vector.load %arg4[%c0_9, %c0_10] : memref<128x32xbf16, #tpu.memory_space<vmem>>, vector<128x32xbf16>
    %cst_11 = arith.constant dense<0.000000e+00> : vector<16x32xf32>
    %22 = tpu.matmul %20, %21, %cst_11 {dimension_numbers = #tpu.dot_dimension_numbers<[1], [0], [0], [1], [0, 0, 1, 1], [], []>} : vector<16x128xbf16>, vector<128x32xbf16>, vector<16x32xf32> -> vector<16x32xf32>
    %c0_12 = arith.constant 0 : index
    %c0_13 = arith.constant 0 : index
    %23 = vector.load %arg5[%c0_12, %c0_13] : memref<1x32xf32, #tpu.memory_space<vmem>>, vector<1x32xf32>
    %24 = vector.broadcast %23 : vector<1x32xf32> to vector<16x32xf32>
    %25 = arith.addf %22, %24 : vector<16x32xf32>
    %26 = arith.addf %0, %25 : vector<16x32xf32>
    %c0_14 = arith.constant 0 : index
    %c0_15 = arith.constant 0 : index
    %27 = vector.load %arg6[%c0_14, %c0_15] : memref<16x32xf32, #tpu.memory_space<vmem>>, vector<16x32xf32>
    tpu.vector_store %arg6[%c0_14, %c0_15], %26 {strides = array<i32>} : memref<16x32xf32, #tpu.memory_space<vmem>>, vector<16x32xf32>,
    return
  }
  func.func @transform_0(%arg0: i32) -> (i32, i32) {
    %c0_i32 = arith.constant 0 : i32
    %c0_i32_0 = arith.constant 0 : i32
    return %arg0, %c0_i32 : i32, i32
  }
  func.func @transform_1(%arg0: i32) -> (i32, i32) {
    %c0_i32 = arith.constant 0 : i32
    %c0_i32_0 = arith.constant 0 : i32
    %c0_i32_1 = arith.constant 0 : i32
    return %c0_i32, %c0_i32_0 : i32, i32
  }
  func.func @transform_2(%arg0: i32) -> (i32, i32) {
    %c0_i32 = arith.constant 0 : i32
    %c0_i32_0 = arith.constant 0 : i32
    %c0_i32_1 = arith.constant 0 : i32
    return %c0_i32, %c0_i32_0 : i32, i32
  }
  func.func @transform_3(%arg0: i32) -> (i32, i32) {
    %c0_i32 = arith.constant 0 : i32
    %c0_i32_0 = arith.constant 0 : i32
    %c0_i32_1 = arith.constant 0 : i32
    return %c0_i32, %c0_i32_0 : i32, i32
  }
  func.func @transform_4(%arg0: i32) -> (i32, i32) {
    %c0_i32 = arith.constant 0 : i32
    %c0_i32_0 = arith.constant 0 : i32
    %c0_i32_1 = arith.constant 0 : i32
    return %c0_i32, %c0_i32_0 : i32, i32
  }
  func.func @transform_5(%arg0: i32) -> (i32, i32) {
    %c0_i32 = arith.constant 0 : i32
    %c0_i32_0 = arith.constant 0 : i32
    return %arg0, %c0_i32 : i32, i32
  }
}

</mosaic_0001>

<llo_original>
// kernel: tpu_custom_call.1
$region0: #{tpu_custom_call.1}
  #allocation0 [shape = 'u32[]', space=smem, size = 0x4, offset = 0x4, fixed_abs, tag = 'smem constant byte address 0x4 - core index']
  #allocation1 [shape = 'u32[144,128]{1,0:T(1,128)}', space=vmem, size = 0x12000, scoped, tag = 'internal scratch']
  %s0 = inlined_call_operand.vmem [shape: f32[16,32], index: 0, kind: input, shape index: {}]
  %s1 = inlined_call_operand.vmem [shape: bf16[32,128], index: 1, kind: input, shape index: {}]
  %s2 = inlined_call_operand.vmem [shape: f32[1,128], index: 2, kind: input, shape index: {}]
  %s3 = inlined_call_operand.vmem [shape: bf16[128,32], index: 3, kind: input, shape index: {}]
  %s4 = inlined_call_operand.vmem [shape: f32[1,32], index: 4, kind: input, shape index: {}]
  %s5 = inlined_call_operand.hbm [shape: f32[16,32], index: 5, kind: output, shape index: {}]
  %s6 = sld [smem:[#allocation0]]
  $region30: #{tpu_custom_call.1} parent=0
    _
  %s8 = ssub.s32 1, %s6
  %s9 = scalar_select 0, %s8, %s6
  $region1: #{tpu_custom_call.1} parent=0
    #allocation2 [shape = 'u8[8192]{0}', space=vmem, size = 0x2000, scoped, tag = 'output window, operand 0, single buffered']
    #allocation3 [shape = 's32[1]{0}', space=sflag, size = 0x4, scoped, tag = 'scoped memory for tpu_custom_call.1']
    %10 = vsyncpa [#allocation3], 0
    // Predicated region
    $region2: #{tpu_custom_call.1} parent=1 // pred_check
      _
    $region3: #{tpu_custom_call.1} parent=1 // pred_check_branch
      %12 = sbr.rel (0) target = $region5
    $region4: #{tpu_custom_call.1} parent=1 // pred_region
      _
    $region5: #{tpu_custom_call.1} parent=1 // pred_fallthru
      _
    // Predicated region
    $region6: #{tpu_custom_call.1} parent=1 // pred_check
      _
    $region7: #{tpu_custom_call.1} parent=1 // pred_check_branch
      %14 = sbr.rel (0) target = $region9
    $region8: #{tpu_custom_call.1} parent=1 // pred_region
      _
    $region9: #{tpu_custom_call.1} parent=1 // pred_fallthru
      _
    // Predicated region
    $region10: #{tpu_custom_call.1} parent=1 // pred_check
      _
    $region11: #{tpu_custom_call.1} parent=1 // pred_check_branch
      %16 = sbr.rel (0) target = $region13
    $region12: #{tpu_custom_call.1} parent=1 // pred_region
      _
    $region13: #{tpu_custom_call.1} parent=1 // pred_fallthru
      _
    // Predicated region
    $region14: #{tpu_custom_call.1} parent=1 // pred_check
      _
    $region15: #{tpu_custom_call.1} parent=1 // pred_check_branch
      %18 = sbr.rel (0) target = $region17
    $region16: #{tpu_custom_call.1} parent=1 // pred_region
      _
    $region17: #{tpu_custom_call.1} parent=1 // pred_fallthru
      _
    // Predicated region
    $region18: #{tpu_custom_call.1} parent=1 // pred_check
      _
    $region19: #{tpu_custom_call.1} parent=1 // pred_check_branch
      %20 = sbr.rel (0) target = $region21
    $region20: #{tpu_custom_call.1} parent=1 // pred_region
      _
    $region21: #{tpu_custom_call.1} parent=1 // pred_fallthru
      _
    %v26 = vld [vmem:[%s0] sm:$0xff]
    %v27 = vld [vmem:[%s0 + $0x8] sm:$0xff]
    %v28 = vpack.c.bf16 %v27, %v26
    %v29 = vld [vmem:[%s1] sm:$0xf]
    %v30 = vld [vmem:[%s1 + $0x4] sm:$0xf]
    %v31 = vld [vmem:[%s1 + $0x8] sm:$0xf]
    %v32 = vld [vmem:[%s1 + $0xc] sm:$0xf]
    %v33 = vld [vmem:[%s2] sm:$0x1]
    %v35 = vlaneseq
    %v36 = vshrl.u32 %v35, 7
    %v37 = vsub.s32 0, %v36
    %v38 = vrot.slane %v33, %v37
    %v44 = vunpack.c.l.b16 %v29
    %v45 = vunpack.c.l.b16 %v30
    %v46 = vunpack.c.l.b16 %v31
    %v47 = vunpack.c.l.b16 %v32
    %v48 = vpack.c.b16 %v45, %v44
    %v49 = vpack.c.b16 %v47, %v46
    %vm52 = vcmask 261120
    %v54 = vsel %vm52, %v28, 0
    %56 = vmatprep.subr.bf16.mxu0 0
    %57 = vmatpush1.bf16.msra.mxu0 %v48
    %58 = vmatprep.subr.bf16.mxu0 0
    %59 = vmatpush1.bf16.msra.mxu0 %v49
    %60 = vmatprep.subr.bf16.mxu0 0
    %61 = vmatpush1.bf16.msra.mxu0 0
    %62 = vmatprep.subr.bf16.mxu0 0
    %63 = vmatpush1.bf16.msra.mxu0 0
    %64 = vmatprep.subr.bf16.mxu0 0
    %65 = vmatpush1.bf16.msra.mxu0 0
    %66 = vmatprep.subr.bf16.mxu0 0
    %67 = vmatpush1.bf16.msra.mxu0 0
    %68 = vmatprep.subr.bf16.mxu0 0
    %69 = vmatpush1.bf16.msra.mxu0 0
    %70 = vmatprep.subr.bf16.mxu0 0
    %71 = vmatpush1.bf16.msra.mxu0 0
    %72 = vmatprep.subr.bf16.mxu0 0
    %73 = vmatpush1.bf16.msra.mxu0 0
    %74 = vmatprep.subr.bf16.mxu0 0
    %75 = vmatpush1.bf16.msra.mxu0 0
    %76 = vmatprep.subr.bf16.mxu0 0
    %77 = vmatpush1.bf16.msra.mxu0 0
    %78 = vmatprep.subr.bf16.mxu0 0
    %79 = vmatpush1.bf16.msra.mxu0 0
    %80 = vmatprep.subr.bf16.mxu0 0
    %81 = vmatpush1.bf16.msra.mxu0 0
    %82 = vmatprep.subr.bf16.mxu0 0
    %83 = vmatpush1.bf16.msra.mxu0 0
    %84 = vmatprep.subr.bf16.mxu0 0
    %85 = vmatpush1.bf16.msra.mxu0 0
    %86 = vmatprep.subr.bf16.mxu0 0
    %87 = vmatpush1.bf16.msra.mxu0 0
    %88 = vmatprep.mubr.bf16.mxu0 0
    %89 = vmatmul.mubr.bf16.gmra.mrb[0].mxu0 %v54
    %v90 = vpop.f32.mrb[0].mxu0
    %v91 = vadd.f32 %v38, %v90
    %v92 = vpop.f32.mrb[0].mxu0
    %v93 = vpop.f32.mrb[0].mxu0
    %v94 = vadd.f32 %v38, %v93
    %v95 = vpop.f32.mrb[0].mxu0
    %96 = vdwg.mxu0
    %v97 = vpack.c.bf16 %v94, %v91
    %v98 = vmul.bf16 %v97, %v97
    %v99 = vmul.bf16 %v97, %v98
    %v100 = vmul.bf16 %v99, 1027030327
    %v101 = vadd.bf16 %v97, %v100
    %v102 = vmul.bf16 %v101, 1061961548
    %v103 = vtanh.bf16.pop %v102
    %v104 = vadd.bf16 %v103, 1065369472
    %v105 = vmul.bf16 %v104, 1056980736
    %v106 = vmul.bf16 %v97, %v105
    %v107 = vld [vmem:[%s3] sm:$0xf]
    %v108 = vld [vmem:[%s3 + $0x4] sm:$0xf]
    %v109 = vld [vmem:[%s3 + $0x8] sm:$0xf]
    %v110 = vld [vmem:[%s3 + $0xc] sm:$0xf]
    %v111 = vld [vmem:[%s3 + $0x10] sm:$0xf]
    %v112 = vld [vmem:[%s3 + $0x14] sm:$0xf]
    %v113 = vld [vmem:[%s3 + $0x18] sm:$0xf]
    %v114 = vld [vmem:[%s3 + $0x1c] sm:$0xf]
    %v115 = vld [vmem:[%s3 + $0x20] sm:$0xf]
    %v116 = vld [vmem:[%s3 + $0x24] sm:$0xf]
    %v117 = vld [vmem:[%s3 + $0x28] sm:$0xf]
    %v118 = vld [vmem:[%s3 + $0x2c] sm:$0xf]
    %v119 = vld [vmem:[%s3 + $0x30] sm:$0xf]
    %v120 = vld [vmem:[%s3 + $0x34] sm:$0xf]
    %v121 = vld [vmem:[%s3 + $0x38] sm:$0xf]
    %v122 = vld [vmem:[%s3 + $0x3c] sm:$0xf]
    %v123 = vld [vmem:[%s4] sm:$0x1]
    %v125 = vlaneseq
    %v126 = vshrl.u32 %v125, 7
    %v127 = vsub.s32 0, %v126
    %v128 = vrot.slane %v123, %v127
    %v146 = vunpack.c.l.b16 %v107
    %v147 = vunpack.c.l.b16 %v108
    %v148 = vunpack.c.l.b16 %v109
    %v149 = vunpack.c.l.b16 %v110
    %v150 = vunpack.c.l.b16 %v111
    %v151 = vunpack.c.l.b16 %v112
    %v152 = vunpack.c.l.b16 %v113
    %v153 = vunpack.c.l.b16 %v114
    %v154 = vunpack.c.l.b16 %v115
    %v155 = vunpack.c.l.b16 %v116
    %v156 = vunpack.c.l.b16 %v117
    %v157 = vunpack.c.l.b16 %v118
    %v158 = vunpack.c.l.b16 %v119
    %v159 = vunpack.c.l.b16 %v120
    %v160 = vunpack.c.l.b16 %v121
    %v161 = vunpack.c.l.b16 %v122
    %v162 = vpack.c.b16 %v147, %v146
    %v163 = vpack.c.b16 %v149, %v148
    %v164 = vpack.c.b16 %v151, %v150
    %v165 = vpack.c.b16 %v153, %v152
    %v166 = vpack.c.b16 %v155, %v154
    %v167 = vpack.c.b16 %v157, %v156
    %v168 = vpack.c.b16 %v159, %v158
    %v169 = vpack.c.b16 %v161, %v160
    %178 = vmatprep.subr.bf16.mxu0 0
    %179 = vmatpush1.bf16.msra.mxu0 %v162
    %180 = vmatprep.subr.bf16.mxu0 0
    %181 = vmatpush1.bf16.msra.mxu0 %v163
    %182 = vmatprep.subr.bf16.mxu0 0
    %183 = vmatpush1.bf16.msra.mxu0 %v164
    %184 = vmatprep.subr.bf16.mxu0 0
    %185 = vmatpush1.bf16.msra.mxu0 %v165
    %186 = vmatprep.subr.bf16.mxu0 0
    %187 = vmatpush1.bf16.msra.mxu0 %v166
    %188 = vmatprep.subr.bf16.mxu0 0
    %189 = vmatpush1.bf16.msra.mxu0 %v167
    %190 = vmatprep.subr.bf16.mxu0 0
    %191 = vmatpush1.bf16.msra.mxu0 %v168
    %192 = vmatprep.subr.bf16.mxu0 0
    %193 = vmatpush1.bf16.msra.mxu0 %v169
    %194 = vmatprep.subr.bf16.mxu0 0
    %195 = vmatpush1.bf16.msra.mxu0 0
    %196 = vmatprep.subr.bf16.mxu0 0
    %197 = vmatpush1.bf16.msra.mxu0 0
    %198 = vmatprep.subr.bf16.mxu0 0
    %199 = vmatpush1.bf16.msra.mxu0 0
    %200 = vmatprep.subr.bf16.mxu0 0
    %201 = vmatpush1.bf16.msra.mxu0 0
    %202 = vmatprep.subr.bf16.mxu0 0
    %203 = vmatpush1.bf16.msra.mxu0 0
    %204 = vmatprep.subr.bf16.mxu0 0
    %205 = vmatpush1.bf16.msra.mxu0 0
    %206 = vmatprep.subr.bf16.mxu0 0
    %207 = vmatpush1.bf16.msra.mxu0 0
    %208 = vmatprep.subr.bf16.mxu0 0
    %209 = vmatpush1.bf16.msra.mxu0 0
    %210 = vmatprep.mubr.bf16.mxu0 0
    %211 = vmatmul.mubr.bf16.gmra.mrb[0].mxu0 %v106
    %v212 = vpop.f32.mrb[0].mxu0
    %v213 = vadd.f32 %v128, %v212
    %v214 = vpop.f32.mrb[0].mxu0
    %v215 = vpop.f32.mrb[0].mxu0
    %v216 = vadd.f32 %v128, %v215
    %v217 = vpop.f32.mrb[0].mxu0
    %218 = vdwg.mxu0
    %v219 = vadd.f32 %v26, %v213
    %v220 = vadd.f32 %v27, %v216
    %221 = vst.msk [vmem:[#allocation2] sm:$0xff] %vm52, %v219
    %222 = vst.msk [vmem:[#allocation2 + $0x8] sm:$0xff] %vm52, %v220
    // Predicated region
    $region22: #{tpu_custom_call.1} parent=1 // pred_check
      _
    $region23: #{tpu_custom_call.1} parent=1 // pred_check_branch
      %224 = sbr.rel (0) target = $region25
    $region24: #{tpu_custom_call.1} parent=1 // pred_region
      %s226 = ssub.s32 256, 256
      %227 = vsyncadd [#allocation3], %s226
      %s228 = sshll.u32 [#allocation2], 4
      %s229 = int_to_ptr.vmem [resolvable:$true] %s228
      %234 = dma.vmem_to_hbm [thread:$0]  %s229, 256, %s5, [#allocation3], 128, 128, 8
    $region25: #{tpu_custom_call.1} parent=1 // pred_fallthru
      _
    // Predicated region
    $region26: #{tpu_custom_call.1} parent=1 // pred_check
      _
    $region27: #{tpu_custom_call.1} parent=1 // pred_check_branch
      %236 = sbr.rel (0) target = $region29
    $region28: #{tpu_custom_call.1} parent=1 // pred_region
      %237 = dma.done [#allocation3], 256
    $region29: #{tpu_custom_call.1} parent=1 // pred_fallthru
      _
    %238 = vsyncpa [#allocation3], 1

// kernel: tpu_custom_call.1
$region0: #{tpu_custom_call.1}
  #allocation0 [shape = 'u32[]', space=smem, size = 0x4, offset = 0x4, fixed_abs, tag = 'smem constant byte address 0x4 - core index']
  #allocation1 [shape = 'u32[144,128]{1,0:T(1,128)}', space=vmem, size = 0x12000, scoped, tag = 'internal scratch']
  %s0 = inlined_call_operand.vmem [shape: f32[16,32], index: 0, kind: input, shape index: {}]
  %s1 = inlined_call_operand.vmem [shape: bf16[32,128], index: 1, kind: input, shape index: {}]
  %s2 = inlined_call_operand.vmem [shape: f32[1,128], index: 2, kind: input, shape index: {}]
  %s3 = inlined_call_operand.vmem [shape: bf16[128,32], index: 3, kind: input, shape index: {}]
  %s4 = inlined_call_operand.vmem [shape: f32[1,32], index: 4, kind: input, shape index: {}]
  %s5 = inlined_call_operand.hbm [shape: f32[16,32], index: 5, kind: output, shape index: {}]
  %s6 = sld [smem:[#allocation0]]
  $region30: #{tpu_custom_call.1} parent=0
    _
  %s8 = ssub.s32 1, %s6
  %s9 = scalar_select 0, %s8, %s6
  $region1: #{tpu_custom_call.1} parent=0
    #allocation2 [shape = 'u8[8192]{0}', space=vmem, size = 0x2000, scoped, tag = 'output window, operand 0, single buffered']
    #allocation3 [shape = 's32[1]{0}', space=sflag, size = 0x4, scoped, tag = 'scoped memory for tpu_custom_call.1']
    %10 = vsyncpa [#allocation3], 0
    // Predicated region
    $region2: #{tpu_custom_call.1} parent=1 // pred_check
      _
    $region3: #{tpu_custom_call.1} parent=1 // pred_check_branch
      %12 = sbr.rel (0) target = $region5
    $region4: #{tpu_custom_call.1} parent=1 // pred_region
      _
    $region5: #{tpu_custom_call.1} parent=1 // pred_fallthru
      _
    // Predicated region
    $region6: #{tpu_custom_call.1} parent=1 // pred_check
      _
    $region7: #{tpu_custom_call.1} parent=1 // pred_check_branch
      %14 = sbr.rel (0) target = $region9
    $region8: #{tpu_custom_call.1} parent=1 // pred_region
      _
    $region9: #{tpu_custom_call.1} parent=1 // pred_fallthru
      _
    // Predicated region
    $region10: #{tpu_custom_call.1} parent=1 // pred_check
      _
    $region11: #{tpu_custom_call.1} parent=1 // pred_check_branch
      %16 = sbr.rel (0) target = $region13
    $region12: #{tpu_custom_call.1} parent=1 // pred_region
      _
    $region13: #{tpu_custom_call.1} parent=1 // pred_fallthru
      _
    // Predicated region
    $region14: #{tpu_custom_call.1} parent=1 // pred_check
      _
    $region15: #{tpu_custom_call.1} parent=1 // pred_check_branch
      %18 = sbr.rel (0) target = $region17
    $region16: #{tpu_custom_call.1} parent=1 // pred_region
      _
    $region17: #{tpu_custom_call.1} parent=1 // pred_fallthru
      _
    // Predicated region
    $region18: #{tpu_custom_call.1} parent=1 // pred_check
      _
    $region19: #{tpu_custom_call.1} parent=1 // pred_check_branch
      %20 = sbr.rel (0) target = $region21
    $region20: #{tpu_custom_call.1} parent=1 // pred_region
      _
    $region21: #{tpu_custom_call.1} parent=1 // pred_fallthru
      _
    %v26 = vld [vmem:[%s0] sm:$0xff]
    %v27 = vld [vmem:[%s0 + $0x8] sm:$0xff]
    %v28 = vpack.c.bf16 %v27, %v26
    %v29 = vld [vmem:[%s1] sm:$0xf]
    %v30 = vld [vmem:[%s1 + $0x4] sm:$0xf]
    %v31 = vld [vmem:[%s1 + $0x8] sm:$0xf]
    %v32 = vld [vmem:[%s1 + $0xc] sm:$0xf]
    %v33 = vld [vmem:[%s2] sm:$0x1]
    %v35 = vlaneseq
    %v36 = vshrl.u32 %v35, 7
    %v37 = vsub.s32 0, %v36
    %v38 = vrot.slane %v33, %v37
    %v44 = vunpack.c.l.b16 %v29
    %v45 = vunpack.c.l.b16 %v30
    %v46 = vunpack.c.l.b16 %v31
    %v47 = vunpack.c.l.b16 %v32
    %v48 = vpack.c.b16 %v45, %v44
    %v49 = vpack.c.b16 %v47, %v46
    %vm52 = vcmask 261120
    %v54 = vsel %vm52, %v28, 0
    %56 = vmatprep.subr.bf16.mxu0 0
    %57 = vmatpush1.bf16.msra.mxu0 %v48
    %58 = vmatprep.subr.bf16.mxu0 0
    %59 = vmatpush1.bf16.msra.mxu0 %v49
    %60 = vmatprep.subr.bf16.mxu0 0
    %61 = vmatpush1.bf16.msra.mxu0 0
    %62 = vmatprep.subr.bf16.mxu0 0
    %63 = vmatpush1.bf16.msra.mxu0 0
    %64 = vmatprep.subr.bf16.mxu0 0
    %65 = vmatpush1.bf16.msra.mxu0 0
    %66 = vmatprep.subr.bf16.mxu0 0
    %67 = vmatpush1.bf16.msra.mxu0 0
    %68 = vmatprep.subr.bf16.mxu0 0
    %69 = vmatpush1.bf16.msra.mxu0 0
    %70 = vmatprep.subr.bf16.mxu0 0
    %71 = vmatpush1.bf16.msra.mxu0 0
    %72 = vmatprep.subr.bf16.mxu0 0
    %73 = vmatpush1.bf16.msra.mxu0 0
    %74 = vmatprep.subr.bf16.mxu0 0
    %75 = vmatpush1.bf16.msra.mxu0 0
    %76 = vmatprep.subr.bf16.mxu0 0
    %77 = vmatpush1.bf16.msra.mxu0 0
    %78 = vmatprep.subr.bf16.mxu0 0
    %79 = vmatpush1.bf16.msra.mxu0 0
    %80 = vmatprep.subr.bf16.mxu0 0
    %81 = vmatpush1.bf16.msra.mxu0 0
    %82 = vmatprep.subr.bf16.mxu0 0
    %83 = vmatpush1.bf16.msra.mxu0 0
    %84 = vmatprep.subr.bf16.mxu0 0
    %85 = vmatpush1.bf16.msra.mxu0 0
    %86 = vmatprep.subr.bf16.mxu0 0
    %87 = vmatpush1.bf16.msra.mxu0 0
    %88 = vmatprep.mubr.bf16.mxu0 0
    %89 = vmatmul.mubr.bf16.gmra.mrb[0].mxu0 %v54
    %v90 = vpop.f32.mrb[0].mxu0
    %v91 = vadd.f32 %v38, %v90
    %v92 = vpop.f32.mrb[0].mxu0
    %v93 = vpop.f32.mrb[0].mxu0
    %v94 = vadd.f32 %v38, %v93
    %v95 = vpop.f32.mrb[0].mxu0
    %96 = vdwg.mxu0
    %v97 = vpack.c.bf16 %v94, %v91
    %v98 = vmul.bf16 %v97, %v97
    %v99 = vmul.bf16 %v97, %v98
    %v100 = vmul.bf16 %v99, 1027030327
    %v101 = vadd.bf16 %v97, %v100
    %v102 = vmul.bf16 %v101, 1061961548
    %v103 = vtanh.bf16.pop %v102
    %v104 = vadd.bf16 %v103, 1065369472
    %v105 = vmul.bf16 %v104, 1056980736
    %v106 = vmul.bf16 %v97, %v105
    %v107 = vld [vmem:[%s3] sm:$0xf]
    %v108 = vld [vmem:[%s3 + $0x4] sm:$0xf]
    %v109 = vld [vmem:[%s3 + $0x8] sm:$0xf]
    %v110 = vld [vmem:[%s3 + $0xc] sm:$0xf]
    %v111 = vld [vmem:[%s3 + $0x10] sm:$0xf]
    %v112 = vld [vmem:[%s3 + $0x14] sm:$0xf]
    %v113 = vld [vmem:[%s3 + $0x18] sm:$0xf]
    %v114 = vld [vmem:[%s3 + $0x1c] sm:$0xf]
    %v115 = vld [vmem:[%s3 + $0x20] sm:$0xf]
    %v116 = vld [vmem:[%s3 + $0x24] sm:$0xf]
    %v117 = vld [vmem:[%s3 + $0x28] sm:$0xf]
    %v118 = vld [vmem:[%s3 + $0x2c] sm:$0xf]
    %v119 = vld [vmem:[%s3 + $0x30] sm:$0xf]
    %v120 = vld [vmem:[%s3 + $0x34] sm:$0xf]
    %v121 = vld [vmem:[%s3 + $0x38] sm:$0xf]
    %v122 = vld [vmem:[%s3 + $0x3c] sm:$0xf]
    %v123 = vld [vmem:[%s4] sm:$0x1]
    %v125 = vlaneseq
    %v126 = vshrl.u32 %v125, 7
    %v127 = vsub.s32 0, %v126
    %v128 = vrot.slane %v123, %v127
    %v146 = vunpack.c.l.b16 %v107
    %v147 = vunpack.c.l.b16 %v108
    %v148 = vunpack.c.l.b16 %v109
    %v149 = vunpack.c.l.b16 %v110
    %v150 = vunpack.c.l.b16 %v111
    %v151 = vunpack.c.l.b16 %v112
    %v152 = vunpack.c.l.b16 %v113
    %v153 = vunpack.c.l.b16 %v114
    %v154 = vunpack.c.l.b16 %v115
    %v155 = vunpack.c.l.b16 %v116
    %v156 = vunpack.c.l.b16 %v117
    %v157 = vunpack.c.l.b16 %v118
    %v158 = vunpack.c.l.b16 %v119
    %v159 = vunpack.c.l.b16 %v120
    %v160 = vunpack.c.l.b16 %v121
    %v161 = vunpack.c.l.b16 %v122
    %v162 = vpack.c.b16 %v147, %v146
    %v163 = vpack.c.b16 %v149, %v148
    %v164 = vpack.c.b16 %v151, %v150
    %v165 = vpack.c.b16 %v153, %v152
    %v166 = vpack.c.b16 %v155, %v154
    %v167 = vpack.c.b16 %v157, %v156
    %v168 = vpack.c.b16 %v159, %v158
    %v169 = vpack.c.b16 %v161, %v160
    %178 = vmatprep.subr.bf16.mxu0 0
    %179 = vmatpush1.bf16.msra.mxu0 %v162
    %180 = vmatprep.subr.bf16.mxu0 0
    %181 = vmatpush1.bf16.msra.mxu0 %v163
    %182 = vmatprep.subr.bf16.mxu0 0
    %183 = vmatpush1.bf16.msra.mxu0 %v164
    %184 = vmatprep.subr.bf16.mxu0 0
    %185 = vmatpush1.bf16.msra.mxu0 %v165
    %186 = vmatprep.subr.bf16.mxu0 0
    %187 = vmatpush1.bf16.msra.mxu0 %v166
    %188 = vmatprep.subr.bf16.mxu0 0
    %189 = vmatpush1.bf16.msra.mxu0 %v167
    %190 = vmatprep.subr.bf16.mxu0 0
    %191 = vmatpush1.bf16.msra.mxu0 %v168
    %192 = vmatprep.subr.bf16.mxu0 0
    %193 = vmatpush1.bf16.msra.mxu0 %v169
    %194 = vmatprep.subr.bf16.mxu0 0
    %195 = vmatpush1.bf16.msra.mxu0 0
    %196 = vmatprep.subr.bf16.mxu0 0
    %197 = vmatpush1.bf16.msra.mxu0 0
    %198 = vmatprep.subr.bf16.mxu0 0
    %199 = vmatpush1.bf16.msra.mxu0 0
    %200 = vmatprep.subr.bf16.mxu0 0
    %201 = vmatpush1.bf16.msra.mxu0 0
    %202 = vmatprep.subr.bf16.mxu0 0
    %203 = vmatpush1.bf16.msra.mxu0 0
    %204 = vmatprep.subr.bf16.mxu0 0
    %205 = vmatpush1.bf16.msra.mxu0 0
    %206 = vmatprep.subr.bf16.mxu0 0
    %207 = vmatpush1.bf16.msra.mxu0 0
    %208 = vmatprep.subr.bf16.mxu0 0
    %209 = vmatpush1.bf16.msra.mxu0 0
    %210 = vmatprep.mubr.bf16.mxu0 0
    %211 = vmatmul.mubr.bf16.gmra.mrb[0].mxu0 %v106
    %v212 = vpop.f32.mrb[0].mxu0
    %v213 = vadd.f32 %v128, %v212
    %v214 = vpop.f32.mrb[0].mxu0
    %v215 = vpop.f32.mrb[0].mxu0
    %v216 = vadd.f32 %v128, %v215
    %v217 = vpop.f32.mrb[0].mxu0
    %218 = vdwg.mxu0
    %v219 = vadd.f32 %v26, %v213
    %v220 = vadd.f32 %v27, %v216
    %221 = vst.msk [vmem:[#allocation2] sm:$0xff] %vm52, %v219
    %222 = vst.msk [vmem:[#allocation2 + $0x8] sm:$0xff] %vm52, %v220
    // Predicated region
    $region22: #{tpu_custom_call.1} parent=1 // pred_check
      _
    $region23: #{tpu_custom_call.1} parent=1 // pred_check_branch
      %224 = sbr.rel (0) target = $region25
    $region24: #{tpu_custom_call.1} parent=1 // pred_region
      %s226 = ssub.s32 256, 256
      %227 = vsyncadd [#allocation3], %s226
      %s228 = sshll.u32 [#allocation2], 4
      %s229 = int_to_ptr.vmem [resolvable:$true] %s228
      %234 = dma.vmem_to_hbm [thread:$0]  %s229, 256, %s5, [#allocation3], 128, 128, 8
    $region25: #{tpu_custom_call.1} parent=1 // pred_fallthru
      _
    // Predicated region
    $region26: #{tpu_custom_call.1} parent=1 // pred_check
      _
    $region27: #{tpu_custom_call.1} parent=1 // pred_check_branch
      %236 = sbr.rel (0) target = $region29
    $region28: #{tpu_custom_call.1} parent=1 // pred_region
      %237 = dma.done [#allocation3], 256
    $region29: #{tpu_custom_call.1} parent=1 // pred_fallthru
      _
    %238 = vsyncpa [#allocation3], 1

</llo_original>
